<compile_context>
chip_gen: v5e
topology: v5e:2x2
jax: 0.10.0
libtpu: 0.0.40
codegen_flags: <defaults>
</compile_context>

<pallas_src>
import numpy as np
import jax
import jax.numpy as jnp
from jax.experimental import pallas as pl
from jax.experimental.pallas import tpu as pltpu


def _round_up(x: int, m: int) -> int:
    return ((x + m - 1) // m) * m


# -----------------------------------------------------------------------------
# Pallas kernel: single K-accumulated matmul stream over [code | report] blocks,
# post-matmul per-row scaling (mean normalization + gamma blend folded together).
# -----------------------------------------------------------------------------
def _make_rgl_kernel(num_code_k_tiles: int):
    def kernel(mask_ref, emb_ref, scale_c_ref, scale_r_ref, out_ref,
               acc_code, acc_report):
        k = pl.program_id(2)

        @pl.when(k == 0)
        def _init():
            acc_code[...] = jnp.zeros_like(acc_code)
            acc_report[...] = jnp.zeros_like(acc_report)

        # raw 0/1 mask tile (bf16) x embedding tile (bf16) -> f32 partial on the MXU
        partial = jnp.dot(mask_ref[...], emb_ref[...],
                          preferred_element_type=jnp.float32)

        @pl.when(k < num_code_k_tiles)
        def _acc_code():
            acc_code[...] += partial

        @pl.when(k >= num_code_k_tiles)
        def _acc_report():
            acc_report[...] += partial

        @pl.when(k == pl.num_programs(2) - 1)
        def _finalize():
            # mean normalization + gamma blend as two per-row scaled adds on (tb, tn)
            out_ref[...] = (acc_code[...] * scale_c_ref[...]
                            + acc_report[...] * scale_r_ref[...]
                            ).astype(out_ref.dtype)

    return kernel


def rgl_pallas(mask_code, code_emb, mask_report, report_emb, gamma,
               *, tb=256, tk=256, tn=512):
    """mask_* are 0/1 float32 (B, Nc) / (B, Nr); *_emb are (Nc, D) / (Nr, D).
    Returns (B, D) float32 = gamma*mean_code + (1-gamma)*mean_report."""
    B, Kc = mask_code.shape
    Kr = mask_report.shape[1]
    D = code_emb.shape[1]

    # per-row scale factors (normalization moved after the matmul, gamma folded in)
    cnt_c = jnp.sum(mask_code, axis=1, keepdims=True)
    cnt_r = jnp.sum(mask_report, axis=1, keepdims=True)
    scale_c = jnp.where(cnt_c > 0, gamma / cnt_c, 0.0).astype(jnp.float32)
    scale_r = jnp.where(cnt_r > 0, (1.0 - gamma) / cnt_r, 0.0).astype(jnp.float32)

    # pad to (8, 128)-aligned fixed buckets
    B8 = _round_up(max(B, 8), 8)
    tb = min(tb, B8)
    B_pad = _round_up(B8, tb)

    D128 = _round_up(max(D, 128), 128)
    tn = min(tn, D128)
    D_pad = _round_up(D128, tn)

    Kc_pad = _round_up(max(Kc, 1), tk)
    Kr_pad = _round_up(max(Kr, 1), tk)
    K_pad = Kc_pad + Kr_pad

    # 0/1 masks cast to bf16 (exact); embeddings streamed as bf16
    mc = jnp.pad(mask_code.astype(jnp.bfloat16), ((0, B_pad - B), (0, Kc_pad - Kc)))
    mr = jnp.pad(mask_report.astype(jnp.bfloat16), ((0, B_pad - B), (0, Kr_pad - Kr)))
    mask = jnp.concatenate([mc, mr], axis=1)                          # (B_pad, K_pad)

    ec = jnp.pad(code_emb.astype(jnp.bfloat16), ((0, Kc_pad - Kc), (0, D_pad - D)))
    er = jnp.pad(report_emb.astype(jnp.bfloat16), ((0, Kr_pad - Kr), (0, D_pad - D)))
    emb = jnp.concatenate([ec, er], axis=0)                           # (K_pad, D_pad)

    sc = jnp.pad(scale_c, ((0, B_pad - B), (0, 0)))                   # (B_pad, 1)
    sr = jnp.pad(scale_r, ((0, B_pad - B), (0, 0)))                   # (B_pad, 1)

    nb, nn, nk = B_pad // tb, D_pad // tn, K_pad // tk
    num_code_k_tiles = Kc_pad // tk

    out = pl.pallas_call(
        _make_rgl_kernel(num_code_k_tiles),
        out_shape=jax.ShapeDtypeStruct((B_pad, D_pad), jnp.float32),
        grid_spec=pltpu.PrefetchScalarGridSpec(
            num_scalar_prefetch=0,
            grid=(nb, nn, nk),
            in_specs=[
                pl.BlockSpec((tb, tk), lambda i, n, k: (i, k)),       # concat mask
                pl.BlockSpec((tk, tn), lambda i, n, k: (k, n)),       # concat embeddings
                pl.BlockSpec((tb, 1), lambda i, n, k: (i, 0)),        # scale_c
                pl.BlockSpec((tb, 1), lambda i, n, k: (i, 0)),        # scale_r
            ],
            out_specs=pl.BlockSpec((tb, tn), lambda i, n, k: (i, n)),
            scratch_shapes=[pltpu.VMEM((tb, tn), jnp.float32),
                            pltpu.VMEM((tb, tn), jnp.float32)],
        ),
        compiler_params=pltpu.CompilerParams(
            dimension_semantics=("parallel", "parallel", "arbitrary")),
    )(mask, emb, sc, sr)

    return out[:B, :D]


# -----------------------------------------------------------------------------
# Host-side glue reproducing get_neighs_batch / mask construction (numpy, as the
# original does on CPU) and the embedding lookups.
# -----------------------------------------------------------------------------
def relational_graph_layer_forward(A_dense, batch_nodes, mode, R_table, C_table, gamma):
    report_code_A, report_report_A, code_code_A = A_dense
    if mode == "report":
        code_neighs_1 = report_code_A[batch_nodes]        # (B, code_size)
        report_neighs_1 = report_report_A[batch_nodes]    # (B, report_size)
    elif mode == "code":
        report_neighs_1 = report_code_A.T[batch_nodes]
        code_neighs_1 = code_code_A[batch_nodes]
    else:
        raise ValueError(mode)

    unique_code = np.unique(np.nonzero(code_neighs_1)[1])
    unique_report = np.unique(np.nonzero(report_neighs_1)[1])
    mask_code_np = (code_neighs_1[:, unique_code] != 0).astype(np.float32)
    mask_report_np = (report_neighs_1[:, unique_report] != 0).astype(np.float32)

    # TODO(synk): fuse this embedding gather into the kernel (scalar-prefetched indices +
    # manual DMA gather from C/R kept at memory_space=pl.ANY) to remove one extra HBM pass
    # over the dominant embedding stream.
    code_emb_matrix = jnp.take(C_table, jnp.asarray(unique_code, dtype=jnp.int32), axis=0)
    report_emb_matrix = jnp.take(R_table, jnp.asarray(unique_report, dtype=jnp.int32), axis=0)

    return rgl_pallas(
        jnp.asarray(mask_code_np),
        code_emb_matrix.astype(jnp.float32),
        jnp.asarray(mask_report_np),
        report_emb_matrix.astype(jnp.float32),
        float(gamma),
    )


if __name__ == "__main__":
    key = jax.random.PRNGKey(0)
    k_rc, k_rr, k_cc, k_R, k_C = jax.random.split(key, 5)

    report_size, code_size, feat_dim = 12, 10, 32
    batch_nodes = np.array([0, 3, 5, 7], dtype=np.int64)   # B = 4
    mode = "report"

    # dense adjacency matrices (A[0], A[1], A[2] of the original, .toarray()'d)
    report_code_A = np.asarray(
        jax.random.bernoulli(k_rc, 0.35, (report_size, code_size))).astype(np.float32)
    report_report_A = np.asarray(
        jax.random.bernoulli(k_rr, 0.35, (report_size, report_size))).astype(np.float32)
    code_code_A = np.asarray(
        jax.random.bernoulli(k_cc, 0.35, (code_size, code_size))).astype(np.float32)

    # embedding tables backing R (report features) and C (code features)
    R_table = jax.random.normal(k_R, (report_size, feat_dim), dtype=jnp.float32)
    C_table = jax.random.normal(k_C, (code_size, feat_dim), dtype=jnp.float32)

    gamma = 0.65  # learnable scalar (module inits it to 1.0; any runtime value is valid)

    out = relational_graph_layer_forward(
        (report_code_A, report_report_A, code_code_A),
        batch_nodes, mode, R_table, C_table, gamma)
    out = jax.block_until_ready(out)

    # ---- reference (PyTorch-order math) using the same bf16-quantized embeddings ----
    code_neighs = report_code_A[batch_nodes]
    report_neighs = report_report_A[batch_nodes]
    uc = np.unique(np.nonzero(code_neighs)[1])
    ur = np.unique(np.nonzero(report_neighs)[1])
    mask_c = (code_neighs[:, uc] != 0).astype(np.float32)
    mask_r = (report_neighs[:, ur] != 0).astype(np.float32)
    C_bf = np.asarray(C_table[uc].astype(jnp.bfloat16).astype(jnp.float32))
    R_bf = np.asarray(R_table[ur].astype(jnp.bfloat16).astype(jnp.float32))

    def mean_agg(m, e):
        n = m.sum(1, keepdims=True)
        mn = np.divide(m, n, out=np.zeros_like(m), where=n > 0)  # NaN (0/0) -> 0
        return mn @ e

    ref = mean_agg(mask_c, C_bf) * gamma + mean_agg(mask_r, R_bf) * (1.0 - gamma)
    assert out.shape == ref.shape, (out.shape, ref.shape)
    np.testing.assert_allclose(np.asarray(out), ref, atol=1e-4, rtol=1e-4)

    print("KERNEL_OK")
</pallas_src>

<mosaic_0001>
module attributes {stable_mosaic.version = 11 : i64} {
  func.func @kernel(%arg0: i32, %arg1: i32, %arg2: i32, %arg3: memref<8x256xbf16, #tpu.memory_space<vmem>>, %arg4: memref<256x128xbf16, #tpu.memory_space<vmem>>, %arg5: memref<8x1xf32, #tpu.memory_space<vmem>>, %arg6: memref<8x1xf32, #tpu.memory_space<vmem>>, %arg7: memref<8x128xf32, #tpu.memory_space<vmem>>, %arg8: memref<8x128xf32, #tpu.memory_space<vmem>>, %arg9: memref<8x128xf32, #tpu.memory_space<vmem>>) attributes {dimension_semantics = [#tpu.dimension_semantics<parallel>, #tpu.dimension_semantics<parallel>, #tpu.dimension_semantics<arbitrary>], iteration_bounds = array<i64: 1, 1, 2>, scalar_prefetch = 0 : i64, scratch_operands = 2 : i64, tpu.core_type = #tpu.core_type<tc>, window_params = [{transform_indices = @transform_0, window_bounds = array<i64: 8, 256>}, {transform_indices = @transform_1, window_bounds = array<i64: 256, 128>}, {transform_indices = @transform_2, window_bounds = array<i64: 8, 1>}, {transform_indices = @transform_3, window_bounds = array<i64: 8, 1>}, {transform_indices = @transform_4, window_bounds = array<i64: 8, 128>}]} {
    %c0_i32 = arith.constant 0 : i32
    %0 = arith.cmpi eq, %arg2, %c0_i32 : i32
    %1 = arith.extui %0 : i1 to i32
    %c0_i32_0 = arith.constant 0 : i32
    %2 = arith.cmpi ne, %1, %c0_i32_0 : i32
    scf.if %2 {
      %cst_9 = arith.constant 0.000000e+00 : f32
      %15 = vector.broadcast %cst_9 : f32 to vector<8x128xf32>
      %c0_10 = arith.constant 0 : index
      %c0_11 = arith.constant 0 : index
      %16 = vector.load %arg8[%c0_10, %c0_11] : memref<8x128xf32, #tpu.memory_space<vmem>>, vector<8x128xf32>
      tpu.vector_store %arg8[%c0_10, %c0_11], %15 {strides = array<i32>} : memref<8x128xf32, #tpu.memory_space<vmem>>, vector<8x128xf32>,
      %cst_12 = arith.constant 0.000000e+00 : f32
      %17 = vector.broadcast %cst_12 : f32 to vector<8x128xf32>
      %c0_13 = arith.constant 0 : index
      %c0_14 = arith.constant 0 : index
      %18 = vector.load %arg9[%c0_13, %c0_14] : memref<8x128xf32, #tpu.memory_space<vmem>>, vector<8x128xf32>
      tpu.vector_store %arg9[%c0_13, %c0_14], %17 {strides = array<i32>} : memref<8x128xf32, #tpu.memory_space<vmem>>, vector<8x128xf32>,
    } else {
    }
    %c0 = arith.constant 0 : index
    %c0_1 = arith.constant 0 : index
    %3 = vector.load %arg3[%c0, %c0_1] : memref<8x256xbf16, #tpu.memory_space<vmem>>, vector<8x256xbf16>
    %c0_2 = arith.constant 0 : index
    %c0_3 = arith.constant 0 : index
    %4 = vector.load %arg4[%c0_2, %c0_3] : memref<256x128xbf16, #tpu.memory_space<vmem>>, vector<256x128xbf16>
    %cst = arith.constant dense<0.000000e+00> : vector<8x128xf32>
    %5 = tpu.matmul %3, %4, %cst {dimension_numbers = #tpu.dot_dimension_numbers<[1], [0], [0], [1], [0, 0, 1, 1], [], []>} : vector<8x256xbf16>, vector<256x128xbf16>, vector<8x128xf32> -> vector<8x128xf32>
    %c1_i32 = arith.constant 1 : i32
    %6 = arith.cmpi slt, %arg2, %c1_i32 : i32
    %7 = arith.extui %6 : i1 to i32
    %c0_i32_4 = arith.constant 0 : i32
    %8 = arith.cmpi ne, %7, %c0_i32_4 : i32
    scf.if %8 {
      %c0_9 = arith.constant 0 : index
      %c0_10 = arith.constant 0 : index
      %15 = vector.load %arg8[%c0_9, %c0_10] : memref<8x128xf32, #tpu.memory_space<vmem>>, vector<8x128xf32>
      %16 = arith.addf %15, %5 : vector<8x128xf32>
      %c0_11 = arith.constant 0 : index
      %c0_12 = arith.constant 0 : index
      %17 = vector.load %arg8[%c0_11, %c0_12] : memref<8x128xf32, #tpu.memory_space<vmem>>, vector<8x128xf32>
      tpu.vector_store %arg8[%c0_11, %c0_12], %16 {strides = array<i32>} : memref<8x128xf32, #tpu.memory_space<vmem>>, vector<8x128xf32>,
    } else {
    }
    %c1_i32_5 = arith.constant 1 : i32
    %9 = arith.cmpi sge, %arg2, %c1_i32_5 : i32
    %10 = arith.extui %9 : i1 to i32
    %c0_i32_6 = arith.constant 0 : i32
    %11 = arith.cmpi ne, %10, %c0_i32_6 : i32
    scf.if %11 {
      %c0_9 = arith.constant 0 : index
      %c0_10 = arith.constant 0 : index
      %15 = vector.load %arg9[%c0_9, %c0_10] : memref<8x128xf32, #tpu.memory_space<vmem>>, vector<8x128xf32>
      %16 = arith.addf %15, %5 : vector<8x128xf32>
      %c0_11 = arith.constant 0 : index
      %c0_12 = arith.constant 0 : index
      %17 = vector.load %arg9[%c0_11, %c0_12] : memref<8x128xf32, #tpu.memory_space<vmem>>, vector<8x128xf32>
      tpu.vector_store %arg9[%c0_11, %c0_12], %16 {strides = array<i32>} : memref<8x128xf32, #tpu.memory_space<vmem>>, vector<8x128xf32>,
    } else {
    }
    %c1_i32_7 = arith.constant 1 : i32
    %12 = arith.cmpi eq, %arg2, %c1_i32_7 : i32
    %13 = arith.extui %12 : i1 to i32
    %c0_i32_8 = arith.constant 0 : i32
    %14 = arith.cmpi ne, %13, %c0_i32_8 : i32
    scf.if %14 {
      %c0_9 = arith.constant 0 : index
      %c0_10 = arith.constant 0 : index
      %15 = vector.load %arg8[%c0_9, %c0_10] : memref<8x128xf32, #tpu.memory_space<vmem>>, vector<8x128xf32>
      %c0_11 = arith.constant 0 : index
      %c0_12 = arith.constant 0 : index
      %16 = vector.load %arg5[%c0_11, %c0_12] : memref<8x1xf32, #tpu.memory_space<vmem>>, vector<8x1xf32>
      %17 = vector.broadcast %16 : vector<8x1xf32> to vector<8x128xf32>
      %18 = arith.mulf %15, %17 : vector<8x128xf32>
      %c0_13 = arith.constant 0 : index
      %c0_14 = arith.constant 0 : index
      %19 = vector.load %arg9[%c0_13, %c0_14] : memref<8x128xf32, #tpu.memory_space<vmem>>, vector<8x128xf32>
      %c0_15 = arith.constant 0 : index
      %c0_16 = arith.constant 0 : index
      %20 = vector.load %arg6[%c0_15, %c0_16] : memref<8x1xf32, #tpu.memory_space<vmem>>, vector<8x1xf32>
      %21 = vector.broadcast %20 : vector<8x1xf32> to vector<8x128xf32>
      %22 = arith.mulf %19, %21 : vector<8x128xf32>
      %23 = arith.addf %18, %22 : vector<8x128xf32>
      %c0_17 = arith.constant 0 : index
      %c0_18 = arith.constant 0 : index
      %24 = vector.load %arg7[%c0_17, %c0_18] : memref<8x128xf32, #tpu.memory_space<vmem>>, vector<8x128xf32>
      tpu.vector_store %arg7[%c0_17, %c0_18], %23 {strides = array<i32>} : memref<8x128xf32, #tpu.memory_space<vmem>>, vector<8x128xf32>,
    } else {
    }
    return
  }
  func.func @transform_0(%arg0: i32, %arg1: i32, %arg2: i32) -> (i32, i32) {
    %c0_i32 = arith.constant 0 : i32
    return %arg0, %arg2 : i32, i32
  }
  func.func @transform_1(%arg0: i32, %arg1: i32, %arg2: i32) -> (i32, i32) {
    %c0_i32 = arith.constant 0 : i32
    return %arg2, %arg1 : i32, i32
  }
  func.func @transform_2(%arg0: i32, %arg1: i32, %arg2: i32) -> (i32, i32) {
    %c0_i32 = arith.constant 0 : i32
    %c0_i32_0 = arith.constant 0 : i32
    return %arg0, %c0_i32 : i32, i32
  }
  func.func @transform_3(%arg0: i32, %arg1: i32, %arg2: i32) -> (i32, i32) {
    %c0_i32 = arith.constant 0 : i32
    %c0_i32_0 = arith.constant 0 : i32
    return %arg0, %c0_i32 : i32, i32
  }
  func.func @transform_4(%arg0: i32, %arg1: i32, %arg2: i32) -> (i32, i32) {
    %c0_i32 = arith.constant 0 : i32
    return %arg0, %arg1 : i32, i32
  }
}

</mosaic_0001>

<llo_original>
// kernel: tpu_custom_call.1
$region0: #{tpu_custom_call.1}
  #allocation0 [shape = 'u32[]', space=smem, size = 0x4, offset = 0x4, fixed_abs, tag = 'smem constant byte address 0x4 - core index']
  #allocation1 [shape = 'u32[72,128]{1,0:T(1,128)}', space=vmem, size = 0x9000, scoped, tag = 'internal scratch']
  #allocation2 [shape = 'f32[8,128]{1,0:T(8,128)}', space=vmem, size = 0x1000, scoped, tag = 'scratch operand']
  #allocation3 [shape = 'f32[8,128]{1,0:T(8,128)}', space=vmem, size = 0x1000, scoped, tag = 'scratch operand']
  %s0 = inlined_call_operand.vmem [shape: bf16[8,512], index: 0, kind: input, shape index: {}]
  %s1 = inlined_call_operand.hbm [shape: bf16[512,128], index: 1, kind: input, shape index: {}]
  %s2 = inlined_call_operand.vmem [shape: f32[8,1], index: 2, kind: input, shape index: {}]
  %s3 = inlined_call_operand.vmem [shape: f32[8,1], index: 3, kind: input, shape index: {}]
  %s4 = inlined_call_operand.hbm [shape: f32[8,128], index: 4, kind: output, shape index: {}]
  %s5 = sld [smem:[#allocation0]]
  $region69: #{tpu_custom_call.1} parent=0
    _
  %s7 = ssub.s32 1, %s5
  %s8 = scalar_select 0, %s7, %s5
  $region1: #{tpu_custom_call.1} parent=0
    #allocation4 [shape = 'u8[131072]{0}', space=vmem, size = 0x20000, scoped, tag = 'input window, operand 1']
    #allocation5 [shape = 's32[2]{0}', space=sflag, size = 0x8, scoped, tag = 'scoped memory for tpu_custom_call.1']
    #allocation6 [shape = 's32[2]{0}', space=sflag, size = 0x8, scoped, tag = 'scoped memory for tpu_custom_call.1']
    #allocation7 [shape = 'u8[4096]{0}', space=vmem, size = 0x1000, scoped, tag = 'output window, operand 0, single buffered']
    %9 = vsyncpa [#allocation5], 0
    %s10 = scalar_lea.sflag [#allocation5], 1
    %11 = vsyncpa %s10, 0
    %12 = vsyncpa [#allocation6], 0
    loop: start=0, step=1, limit=4
    $region2: #{tpu_custom_call.1} parent=1 // loop_pre_header
      _
    $region3: #{tpu_custom_call.1} parent=1 // loop_header
      %s14 = sphi 0, %s18
      %p15 = scmp.ge.s32.totalorder %s14, 4
      %s21 = sphi 0, %s40
      %s22 = sphi 0, %s36
      %s23 = sphi 0, %s32
      %s24 = sphi 0, %s21
      %s25 = sphi 0, %s22
      %s26 = sphi 0, %s23
      %s27 = sphi 0, %s24
      %s28 = sphi 0, %s25
      %s29 = sphi 0, %s26
      %s45 = sphi 0, %s47
      %s48 = sphi 0, %s45
      %s49 = sphi 0, %s48
      %s65 = sphi 0, %s49
      %s73 = sphi 0, %s75
      %s76 = sphi 0, %s73
      %s77 = sphi 0, %s76
      %s93 = sphi 0, %s77
      %s99 = sphi 0, %s101
      %s102 = sphi 0, %s99
      %s103 = sphi 0, %s102
      %s119 = sphi 0, %s103
      %s125 = sphi 0, %s127
      %s128 = sphi 0, %s125
      %s129 = sphi 0, %s128
      %s145 = sphi 0, %s129
      %s153 = sphi 0, %s155
      %s156 = sphi 0, %s153
      %s157 = sphi 0, %s156
      %s173 = sphi 0, %s157
    $region4: #{tpu_custom_call.1} parent=1 // loop_header_branch
      %17 = sbr.rel (%p15) target = $region8
    $region5: #{tpu_custom_call.1} parent=1 // loop_body
      %s19 = ssub.s32 %s14, 1
      %s20 = ssub.s32 %s14, 2
      %s30 = sadd.s32 1, %s23
      %p31 = scmp.ge.s32.totalorder %s30, 2
      %s32 = scalar_select %p31, 0, %s30
      %s33 = sadd.s32 1, %s22
      %s34 = scalar_select %p31, %s33, %s22
      %p35 = scmp.ge.s32.totalorder %s34, 1
      %s36 = scalar_select %p35, 0, %s34
      %s37 = sadd.s32 1, %s21
      %s38 = scalar_select %p35, %s37, %s21
      %p39 = scmp.ge.s32.totalorder %s38, 1
      %s40 = scalar_select %p39, 0, %s38
      %s41 = ssub.s32 %s21, %s40
      %s42 = ssub.s32 %s23, %s32
      %s43 = sor.u32 %s41, %s42
      %p44 = scmp.eq.s32.totalorder %s43, 0
      %s46 = sadd.s32 %s45, 1
      %s47 = scalar_select %p44, %s45, %s46
      %p50 = pneg %p44
      %p51 = scmp.eq.s32.totalorder %s14, 1
      %p52 = por %p50, %p51
      %p53 = scmp.ne.s32.totalorder %s45, %s48
      %p54 = scmp.eq.s32.totalorder %s14, 0
      %p55 = por %p53, %p54
      %p56 = scmp.ne.s32.totalorder %s45, %s48
      %p57 = scmp.eq.s32.totalorder %s19, 1
      %p58 = por %p56, %p57
      %p59 = scmp.ne.s32.totalorder %s48, %s49
      %p60 = scmp.eq.s32.totalorder %s19, 0
      %p61 = por %p59, %p60
      %p62 = scmp.ne.s32.totalorder %s48, %s49
      %p63 = scmp.eq.s32.totalorder %s20, 1
      %p64 = por %p62, %p63
      %p66 = scmp.ne.s32.totalorder %s49, %s65
      %p67 = scmp.eq.s32.totalorder %s20, 0
      %p68 = por %p66, %p67
      %s69 = ssub.s32 %s23, %s32
      %s70 = ssub.s32 %s22, %s36
      %s71 = sor.u32 %s69, %s70
      %p72 = scmp.eq.s32.totalorder %s71, 0
      %s74 = sadd.s32 %s73, 1
      %s75 = scalar_select %p72, %s73, %s74
      %p78 = pneg %p72
      %p79 = scmp.eq.s32.totalorder %s14, 1
      %p80 = por %p78, %p79
      %p81 = scmp.ne.s32.totalorder %s73, %s76
      %p82 = scmp.eq.s32.totalorder %s14, 0
      %p83 = por %p81, %p82
      %p84 = scmp.ne.s32.totalorder %s73, %s76
      %p85 = scmp.eq.s32.totalorder %s19, 1
      %p86 = por %p84, %p85
      %p87 = scmp.ne.s32.totalorder %s76, %s77
      %p88 = scmp.eq.s32.totalorder %s19, 0
      %p89 = por %p87, %p88
      %p90 = scmp.ne.s32.totalorder %s76, %s77
      %p91 = scmp.eq.s32.totalorder %s20, 1
      %p92 = por %p90, %p91
      %p94 = scmp.ne.s32.totalorder %s77, %s93
      %p95 = scmp.eq.s32.totalorder %s20, 0
      %p96 = por %p94, %p95
      %s97 = ssub.s32 %s21, %s40
      %p98 = scmp.eq.s32.totalorder %s97, 0
      %s100 = sadd.s32 %s99, 1
      %s101 = scalar_select %p98, %s99, %s100
      %p104 = pneg %p98
      %p105 = scmp.eq.s32.totalorder %s14, 1
      %p106 = por %p104, %p105
      %p107 = scmp.ne.s32.totalorder %s99, %s102
      %p108 = scmp.eq.s32.totalorder %s14, 0
      %p109 = por %p107, %p108
      %p110 = scmp.ne.s32.totalorder %s99, %s102
      %p111 = scmp.eq.s32.totalorder %s19, 1
      %p112 = por %p110, %p111
      %p113 = scmp.ne.s32.totalorder %s102, %s103
      %p114 = scmp.eq.s32.totalorder %s19, 0
      %p115 = por %p113, %p114
      %p116 = scmp.ne.s32.totalorder %s102, %s103
      %p117 = scmp.eq.s32.totalorder %s20, 1
      %p118 = por %p116, %p117
      %p120 = scmp.ne.s32.totalorder %s103, %s119
      %p121 = scmp.eq.s32.totalorder %s20, 0
      %p122 = por %p120, %p121
      %s123 = ssub.s32 %s21, %s40
      %p124 = scmp.eq.s32.totalorder %s123, 0
      %s126 = sadd.s32 %s125, 1
      %s127 = scalar_select %p124, %s125, %s126
      %p130 = pneg %p124
      %p131 = scmp.eq.s32.totalorder %s14, 1
      %p132 = por %p130, %p131
      %p133 = scmp.ne.s32.totalorder %s125, %s128
      %p134 = scmp.eq.s32.totalorder %s14, 0
      %p135 = por %p133, %p134
      %p136 = scmp.ne.s32.totalorder %s125, %s128
      %p137 = scmp.eq.s32.totalorder %s19, 1
      %p138 = por %p136, %p137
      %p139 = scmp.ne.s32.totalorder %s128, %s129
      %p140 = scmp.eq.s32.totalorder %s19, 0
      %p141 = por %p139, %p140
      %p142 = scmp.ne.s32.totalorder %s128, %s129
      %p143 = scmp.eq.s32.totalorder %s20, 1
      %p144 = por %p142, %p143
      %p146 = scmp.ne.s32.totalorder %s129, %s145
      %p147 = scmp.eq.s32.totalorder %s20, 0
      %p148 = por %p146, %p147
      %s149 = ssub.s32 %s21, %s40
      %s150 = ssub.s32 %s22, %s36
      %s151 = sor.u32 %s149, %s150
      %p152 = scmp.eq.s32.totalorder %s151, 0
      %s154 = sadd.s32 %s153, 1
      %s155 = scalar_select %p152, %s153, %s154
      %p158 = pneg %p152
      %p159 = scmp.eq.s32.totalorder %s14, 1
      %p160 = por %p158, %p159
      %p161 = scmp.ne.s32.totalorder %s153, %s156
      %p162 = scmp.eq.s32.totalorder %s14, 0
      %p163 = por %p161, %p162
      %p164 = scmp.ne.s32.totalorder %s153, %s156
      %p165 = scmp.eq.s32.totalorder %s19, 1
      %p166 = por %p164, %p165
      %p167 = scmp.ne.s32.totalorder %s156, %s157
      %p168 = scmp.eq.s32.totalorder %s19, 0
      %p169 = por %p167, %p168
      %p170 = scmp.ne.s32.totalorder %s156, %s157
      %p171 = scmp.eq.s32.totalorder %s20, 1
      %p172 = por %p170, %p171
      %p174 = scmp.ne.s32.totalorder %s157, %s173
      %p175 = scmp.eq.s32.totalorder %s20, 0
      %p176 = por %p174, %p175
      %p177 = scmp.le.s32.totalorder 1, %s14
      %p178 = scmp.lt.s32.totalorder %s14, 3
      %p179 = pnand %p177, %p178
      %p180 = pneg %p179
      // Predicated region
      $region9: #{tpu_custom_call.1} parent=5 // pred_check
        _
      $region10: #{tpu_custom_call.1} parent=5 // pred_check_branch
        %182 = sbr.rel (%p179) target = $region12
      $region11: #{tpu_custom_call.1} parent=5 // pred_region
        %s183 = ssub.s32 %s14, 1
        // Predicated region
        $region13: #{tpu_custom_call.1} parent=11 // pred_check
          %p184 = pneg %p115
        $region14: #{tpu_custom_call.1} parent=11 // pred_check_branch
          %186 = sbr.rel (%p184) target = $region16
        $region15: #{tpu_custom_call.1} parent=11 // pred_region
          %p187 = scmp.lt.s32.totalorder %s24, 0
          %s188 = scalar_select %p187, %s24, 0
          %s189 = smul.addr %s188, 8
          %s190 = scalar_lea.vmem %s2, %s189
        $region16: #{tpu_custom_call.1} parent=11 // pred_fallthru
          _
        // Predicated region
        $region17: #{tpu_custom_call.1} parent=11 // pred_check
          %p191 = pneg %p141
        $region18: #{tpu_custom_call.1} parent=11 // pred_check_branch
          %193 = sbr.rel (%p191) target = $region20
        $region19: #{tpu_custom_call.1} parent=11 // pred_region
          %p194 = scmp.lt.s32.totalorder %s24, 0
          %s195 = scalar_select %p194, %s24, 0
          %s196 = smul.addr %s195, 8
          %s197 = scalar_lea.vmem %s3, %s196
        $region20: #{tpu_custom_call.1} parent=11 // pred_fallthru
          _
      $region12: #{tpu_custom_call.1} parent=5 // pred_fallthru
        _
      %p198 = scmp.lt.s32.totalorder %s14, 2
      // Predicated region
      $region21: #{tpu_custom_call.1} parent=5 // pred_check
        %p199 = pneg %p198
      $region22: #{tpu_custom_call.1} parent=5 // pred_check_branch
        %201 = sbr.rel (%p199) target = $region24
      $region23: #{tpu_custom_call.1} parent=5 // pred_region
        // Predicated region
        $region25: #{tpu_custom_call.1} parent=23 // pred_check
          %p202 = pneg %p55
        $region26: #{tpu_custom_call.1} parent=23 // pred_check_branch
          %204 = sbr.rel (%p202) target = $region28
        $region27: #{tpu_custom_call.1} parent=23 // pred_region
          %s205 = smul.u32 2, %s23
          %p206 = scmp.lt.s32.totalorder %s21, 0
          %s207 = scalar_select %p206, %s21, 0
          %p208 = scmp.lt.s32.totalorder %s205, 3
          %s209 = scalar_select %p208, %s205, 3
          %s210 = smul.addr %s207, 4
          %s211 = sadd.s32 %s209, %s210
          %s212 = smul.addr %s211, 4
          %s213 = scalar_lea.vmem %s0, %s212
          %s214 = smul.u32 2, %s23
        $region28: #{tpu_custom_call.1} parent=23 // pred_fallthru
          _
        // Predicated region
        $region29: #{tpu_custom_call.1} parent=23 // pred_check
          %p215 = pneg %p83
        $region30: #{tpu_custom_call.1} parent=23 // pred_check_branch
          %217 = sbr.rel (%p215) target = $region32
        $region31: #{tpu_custom_call.1} parent=23 // pred_region
          %s218 = sand.u32 %s73, 1
          %s219 = scalar_lea.sflag [#allocation5], %s218
          %s220 = sand.u32 %s73, 1
          %s221 = smul.addr %s220, 128
          %s222 = scalar_lea.vmem [#allocation4], %s221
          %s223 = smul.u32 32, %s23
          %225 = vsyncadd %s219, 0
          %s226 = sadd.s32 %s22, %s223
          %s227 = smul.addr %s226, 4
          %s228 = scalar_lea.hbm %s1, %s227
          %s229 = sshll.u32 %s228, 4
          %s230 = int_to_ptr.hbm [resolvable:$true] %s229
          %s231 = sshll.u32 %s222, 4
          %s232 = int_to_ptr.vmem [resolvable:$true] %s231
          %237 = dma.hbm_to_vmem [thread:$0]  %s230, 2048, %s232, %s219, 64, 64, 4
        $region32: #{tpu_custom_call.1} parent=23 // pred_fallthru
          _
      $region24: #{tpu_custom_call.1} parent=5 // pred_fallthru
        _
      %p238 = scmp.le.s32.totalorder 1, %s14
      %p239 = scmp.lt.s32.totalorder %s14, 3
      %p240 = pnand %p238, %p239
      %p241 = pneg %p240
      // Predicated region
      $region33: #{tpu_custom_call.1} parent=5 // pred_check
        _
      $region34: #{tpu_custom_call.1} parent=5 // pred_check_branch
        %243 = sbr.rel (%p240) target = $region36
      $region35: #{tpu_custom_call.1} parent=5 // pred_region
        %s244 = ssub.s32 %s14, 1
        %s245 = sand.u32 %s76, 1
        %s246 = scalar_lea.sflag [#allocation5], %s245
        %s247 = sand.u32 %s76, 1
        %s248 = smul.addr %s247, 128
        %s249 = scalar_lea.vmem [#allocation4], %s248
        // Predicated region
        $region37: #{tpu_custom_call.1} parent=35 // pred_check
          %p250 = pneg %p89
        $region38: #{tpu_custom_call.1} parent=35 // pred_check_branch
          %252 = sbr.rel (%p250) target = $region40
        $region39: #{tpu_custom_call.1} parent=35 // pred_region
          %254 = dma.done %s246, 2048
        $region40: #{tpu_custom_call.1} parent=35 // pred_fallthru
          _
        %s255 = smul.u32 2, %s26
        %p256 = scmp.lt.s32.totalorder %s24, 0
        %s257 = scalar_select %p256, %s24, 0
        %p258 = scmp.lt.s32.totalorder %s255, 3
        %s259 = scalar_select %p258, %s255, 3
        %s260 = smul.addr %s257, 4
        %s261 = sadd.s32 %s259, %s260
        %s262 = smul.addr %s261, 4
        %s263 = scalar_lea.vmem %s0, %s262
        %p264 = pneg %p61
        %p265 = pneg %p58
        %s266 = sand.u32 %s76, 1
        %s267 = scalar_lea.sflag [#allocation5], %s266
        %s268 = sand.u32 %s76, 1
        %s269 = smul.addr %s268, 128
        %s270 = scalar_lea.vmem [#allocation4], %s269
        %p271 = pneg %p89
        %p272 = pneg %p86
        %p273 = scmp.lt.s32.totalorder %s24, 0
        %s274 = scalar_select %p273, %s24, 0
        %s275 = smul.addr %s274, 8
        %s276 = scalar_lea.vmem %s2, %s275
        %p277 = pneg %p115
        %p278 = pneg %p112
        %p279 = scmp.lt.s32.totalorder %s24, 0
        %s280 = scalar_select %p279, %s24, 0
        %s281 = smul.addr %s280, 8
        %s282 = scalar_lea.vmem %s3, %s281
        %p283 = pneg %p141
        %p284 = pneg %p138
        %p285 = pneg %p169
        %p286 = pneg %p166
        %s287 = smul.u32 2, %s26
        %p288 = scmp.lt.s32.totalorder %s24, 0
        %s289 = scalar_select %p288, %s24, 0
        %p290 = scmp.lt.s32.totalorder %s287, 3
        %s291 = scalar_select %p290, %s287, 3
        %s292 = smul.addr %s289, 4
        %s293 = sadd.s32 %s291, %s292
        %s294 = smul.addr %s293, 4
        %s295 = scalar_lea.vmem %s0, %s294
        %s296 = smul.u32 2, %s26
        %s297 = smul.u32 32, %s26
        %p298 = scmp.lt.s32.totalorder %s24, 0
        %s299 = scalar_select %p298, %s24, 0
        %s300 = smul.addr %s299, 8
        %s301 = scalar_lea.vmem %s2, %s300
        %p302 = scmp.lt.s32.totalorder %s24, 0
        %s303 = scalar_select %p302, %s24, 0
        %s304 = smul.addr %s303, 8
        %s305 = scalar_lea.vmem %s3, %s304
        %p306 = scmp.eq.s32.totalorder %s26, 0
        // Predicated region
        $region41: #{tpu_custom_call.1} parent=35 // pred_check
          %p307 = pneg %p306
        $region42: #{tpu_custom_call.1} parent=35 // pred_check_branch
          %309 = sbr.rel (%p307) target = $region44
        $region43: #{tpu_custom_call.1} parent=35 // pred_region
          %310 = vst [vmem:[#allocation2] sm:$0xff] 0.0
          %311 = vst [vmem:[#allocation3] sm:$0xff] 0.0
        $region44: #{tpu_custom_call.1} parent=35 // pred_fallthru
          _
        %v312 = vld [vmem:[%s295] sm:$0xff]
        %v313 = vld [vmem:[%s249] sm:$0xf]
        %v314 = vld [vmem:[%s249 + $0x4] sm:$0xf]
        %v315 = vld [vmem:[%s249 + $0x8] sm:$0xf]
        %v316 = vld [vmem:[%s249 + $0xc] sm:$0xf]
        %v317 = vld [vmem:[%s249 + $0x10] sm:$0xf]
        %v318 = vld [vmem:[%s249 + $0x14] sm:$0xf]
        %v319 = vld [vmem:[%s249 + $0x18] sm:$0xf]
        %v320 = vld [vmem:[%s249 + $0x1c] sm:$0xf]
        %v321 = vld [vmem:[%s249 + $0x20] sm:$0xf]
        %v322 = vld [vmem:[%s249 + $0x24] sm:$0xf]
        %v323 = vld [vmem:[%s249 + $0x28] sm:$0xf]
        %v324 = vld [vmem:[%s249 + $0x2c] sm:$0xf]
        %v325 = vld [vmem:[%s249 + $0x30] sm:$0xf]
        %v326 = vld [vmem:[%s249 + $0x34] sm:$0xf]
        %v327 = vld [vmem:[%s249 + $0x38] sm:$0xf]
        %v328 = vld [vmem:[%s249 + $0x3c] sm:$0xf]
        %v329 = vld [vmem:[%s249 + $0x40] sm:$0xf]
        %v330 = vld [vmem:[%s249 + $0x44] sm:$0xf]
        %v331 = vld [vmem:[%s249 + $0x48] sm:$0xf]
        %v332 = vld [vmem:[%s249 + $0x4c] sm:$0xf]
        %v333 = vld [vmem:[%s249 + $0x50] sm:$0xf]
        %v334 = vld [vmem:[%s249 + $0x54] sm:$0xf]
        %v335 = vld [vmem:[%s249 + $0x58] sm:$0xf]
        %v336 = vld [vmem:[%s249 + $0x5c] sm:$0xf]
        %v337 = vld [vmem:[%s249 + $0x60] sm:$0xf]
        %v338 = vld [vmem:[%s249 + $0x64] sm:$0xf]
        %v339 = vld [vmem:[%s249 + $0x68] sm:$0xf]
        %v340 = vld [vmem:[%s249 + $0x6c] sm:$0xf]
        %v341 = vld [vmem:[%s249 + $0x70] sm:$0xf]
        %v342 = vld [vmem:[%s249 + $0x74] sm:$0xf]
        %v343 = vld [vmem:[%s249 + $0x78] sm:$0xf]
        %v344 = vld [vmem:[%s249 + $0x7c] sm:$0xf]
        %v346 = vunpack.c.l.b16 %v312
        %v347 = vunpack.c.h.b16 %v312
        %v348 = vpack.c.b16 %v346, %v346
        %v349 = vpack.c.b16 %v347, %v347
        %v384 = vunpack.c.l.b16 %v313
        %v385 = vunpack.c.l.b16 %v314
        %v386 = vunpack.c.l.b16 %v315
        %v387 = vunpack.c.l.b16 %v316
        %v388 = vunpack.c.l.b16 %v317
        %v389 = vunpack.c.l.b16 %v318
        %v390 = vunpack.c.l.b16 %v319
        %v391 = vunpack.c.l.b16 %v320
        %v392 = vunpack.c.l.b16 %v321
        %v393 = vunpack.c.l.b16 %v322
        %v394 = vunpack.c.l.b16 %v323
        %v395 = vunpack.c.l.b16 %v324
        %v396 = vunpack.c.l.b16 %v325
        %v397 = vunpack.c.l.b16 %v326
        %v398 = vunpack.c.l.b16 %v327
        %v399 = vunpack.c.l.b16 %v328
        %v400 = vunpack.c.l.b16 %v329
        %v401 = vunpack.c.l.b16 %v330
        %v402 = vunpack.c.l.b16 %v331
        %v403 = vunpack.c.l.b16 %v332
        %v404 = vunpack.c.l.b16 %v333
        %v405 = vunpack.c.l.b16 %v334
        %v406 = vunpack.c.l.b16 %v335
        %v407 = vunpack.c.l.b16 %v336
        %v408 = vunpack.c.l.b16 %v337
        %v409 = vunpack.c.l.b16 %v338
        %v410 = vunpack.c.l.b16 %v339
        %v411 = vunpack.c.l.b16 %v340
        %v412 = vunpack.c.l.b16 %v341
        %v413 = vunpack.c.l.b16 %v342
        %v414 = vunpack.c.l.b16 %v343
        %v415 = vunpack.c.l.b16 %v344
        %v416 = vpack.c.b16 %v385, %v384
        %v417 = vpack.c.b16 %v387, %v386
        %v418 = vpack.c.b16 %v389, %v388
        %v419 = vpack.c.b16 %v391, %v390
        %v420 = vpack.c.b16 %v393, %v392
        %v421 = vpack.c.b16 %v395, %v394
        %v422 = vpack.c.b16 %v397, %v396
        %v423 = vpack.c.b16 %v399, %v398
        %v424 = vpack.c.b16 %v401, %v400
        %v425 = vpack.c.b16 %v403, %v402
        %v426 = vpack.c.b16 %v405, %v404
        %v427 = vpack.c.b16 %v407, %v406
        %v428 = vpack.c.b16 %v409, %v408
        %v429 = vpack.c.b16 %v411, %v410
        %v430 = vpack.c.b16 %v413, %v412
        %v431 = vpack.c.b16 %v415, %v414
        %448 = vmatpush.bf16.msra.mxu0 %v423
        %449 = vmatpush.bf16.msra.mxu0 %v422
        %450 = vmatpush.bf16.msra.mxu0 %v421
        %451 = vmatpush.bf16.msra.mxu0 %v420
        %452 = vmatpush.bf16.msra.mxu0 %v419
        %453 = vmatpush.bf16.msra.mxu0 %v418
        %454 = vmatpush.bf16.msra.mxu0 %v417
        %455 = vmatpush.bf16.msra.mxu0 %v416
        %456 = vmatmul.bf16.gmra.mxu0 %v348
        %v457 = vpop.f32.mrf.mxu0
        %v458 = vadd.f32 0.0, %v457
        %v459 = vpop.f32.mrf.mxu0
        %460 = vdwg.mxu0
        %461 = vmatpush.bf16.msra.mxu0 %v431
        %462 = vmatpush.bf16.msra.mxu0 %v430
        %463 = vmatpush.bf16.msra.mxu0 %v429
        %464 = vmatpush.bf16.msra.mxu0 %v428
        %465 = vmatpush.bf16.msra.mxu0 %v427
        %466 = vmatpush.bf16.msra.mxu0 %v426
        %467 = vmatpush.bf16.msra.mxu0 %v425
        %468 = vmatpush.bf16.msra.mxu0 %v424
        %469 = vmatmul.bf16.gmra.mxu0 %v349
        %v470 = vpop.f32.mrf.mxu0
        %v471 = vadd.f32 %v458, %v470
        %v472 = vpop.f32.mrf.mxu0
        %473 = vdwg.mxu0
        %p474 = scmp.lt.s32.totalorder %s26, 1
        // Predicated region
        $region45: #{tpu_custom_call.1} parent=35 // pred_check
          %p475 = pneg %p474
        $region46: #{tpu_custom_call.1} parent=35 // pred_check_branch
          %477 = sbr.rel (%p475) target = $region48
        $region47: #{tpu_custom_call.1} parent=35 // pred_region
          %v478 = vld [vmem:[#allocation2] sm:$0xff]
          %v479 = vadd.f32 %v478, %v471
          %480 = vst [vmem:[#allocation2] sm:$0xff] %v479
        $region48: #{tpu_custom_call.1} parent=35 // pred_fallthru
          _
        %p481 = scmp.ge.s32.totalorder %s26, 1
        // Predicated region
        $region49: #{tpu_custom_call.1} parent=35 // pred_check
          %p482 = pneg %p481
        $region50: #{tpu_custom_call.1} parent=35 // pred_check_branch
          %484 = sbr.rel (%p482) target = $region52
        $region51: #{tpu_custom_call.1} parent=35 // pred_region
          %v485 = vld [vmem:[#allocation3] sm:$0xff]
          %v486 = vadd.f32 %v485, %v471
          %487 = vst [vmem:[#allocation3] sm:$0xff] %v486
        $region52: #{tpu_custom_call.1} parent=35 // pred_fallthru
          _
        %p488 = scmp.eq.s32.totalorder %s26, 1
        // Predicated region
        $region53: #{tpu_custom_call.1} parent=35 // pred_check
          %p489 = pneg %p488
        $region54: #{tpu_custom_call.1} parent=35 // pred_check_branch
          %491 = sbr.rel (%p489) target = $region56
        $region55: #{tpu_custom_call.1} parent=35 // pred_region
          %v492 = vld [vmem:[#allocation2] sm:$0xff]
          %v493 = vld [vmem:[%s301] sm:$0xff]
          %495 = vset.pattern.permute.xlu0 0
          %496 = vperm.xlu0 %495, %v493
          %v497 = vpop.permute.xlu0 %496
          %v499 = vmul.f32 %v492, %v497
          %v500 = vld [vmem:[#allocation3] sm:$0xff]
          %v501 = vld [vmem:[%s305] sm:$0xff]
          %503 = vset.pattern.permute.xlu0 0
          %504 = vperm.xlu0 %503, %v501
          %v505 = vpop.permute.xlu0 %504
          %v507 = vmul.f32 %v500, %v505
          %v508 = vadd.f32 %v499, %v507
          %509 = vst [vmem:[#allocation7] sm:$0xff] %v508
        $region56: #{tpu_custom_call.1} parent=35 // pred_fallthru
          _
        // Predicated region
        $region57: #{tpu_custom_call.1} parent=35 // pred_check
          %p510 = pneg %p166
        $region58: #{tpu_custom_call.1} parent=35 // pred_check_branch
          %512 = sbr.rel (%p510) target = $region60
        $region59: #{tpu_custom_call.1} parent=35 // pred_region
          %514 = vsyncadd [#allocation6], 0
          %s515 = sadd.s32 %s25, %s24
          %s516 = smul.addr %s515, 8
          %s517 = scalar_lea.hbm %s4, %s516
          %s519 = sshll.u32 [#allocation7], 4
          %s520 = int_to_ptr.vmem [resolvable:$true] %s519
          %s521 = sshll.u32 %s517, 4
          %s522 = int_to_ptr.hbm [resolvable:$true] %s521
          %524 = dma.vmem_to_hbm [thread:$0]  %s520, 128, %s522, [#allocation6]
        $region60: #{tpu_custom_call.1} parent=35 // pred_fallthru
          _
        // Predicated region
        $region61: #{tpu_custom_call.1} parent=35 // pred_check
          %p525 = pneg %p166
        $region62: #{tpu_custom_call.1} parent=35 // pred_check_branch
          %527 = sbr.rel (%p525) target = $region64
        $region63: #{tpu_custom_call.1} parent=35 // pred_region
          %529 = dma.done [#allocation6], 128
        $region64: #{tpu_custom_call.1} parent=35 // pred_fallthru
          _
      $region36: #{tpu_custom_call.1} parent=5 // pred_fallthru
        _
      %p530 = scmp.le.s32.totalorder 2, %s14
      // Predicated region
      $region65: #{tpu_custom_call.1} parent=5 // pred_check
        %p531 = pneg %p530
      $region66: #{tpu_custom_call.1} parent=5 // pred_check_branch
        %533 = sbr.rel (%p531) target = $region68
      $region67: #{tpu_custom_call.1} parent=5 // pred_region
        %s534 = ssub.s32 %s14, 2
      $region68: #{tpu_custom_call.1} parent=5 // pred_fallthru
        _
    $region6: #{tpu_custom_call.1} parent=1 // loop_footer
      %s18 = sadd.s32 1, %s14
    $region7: #{tpu_custom_call.1} parent=1 // loop_footer_branch
      %13 = sbr.rel target = $region3
    $region8: #{tpu_custom_call.1} parent=1 // loop_exit
      _
    %535 = vsyncpa [#allocation5], 1
    %s536 = scalar_lea.sflag [#allocation5], 1
    %537 = vsyncpa %s536, 1
    %538 = vsyncpa [#allocation6], 1
    %s539 = scalar_lea.sflag [#allocation6], 1
    %540 = vsyncpa %s539, 1

</llo_original>
